<compile_context>
chip_gen: v7x
topology: tpu7x:2x2x1
jax: 0.10.0
libtpu: 0.0.40
codegen_flags: <defaults>
</compile_context>

<pallas_src>
import jax
import jax.numpy as jnp
from jax.experimental import pallas as pl
from jax.experimental.pallas import tpu as pltpu


# --------------------------------------------------------------------------
# Kernel
# --------------------------------------------------------------------------
def cblock_kernel(x_ref, pos_w_ref, pos_b_ref, w1_ref, b1_ref,
                  attn_w_ref, attn_b_ref, w2_ref, b2_ref, o_ref):
    Bt, L, Cp = x_ref.shape
    M = Bt * L
    x = x_ref[...].astype(jnp.float32)                      # (Bt, L, Cp)

    def conv_im2col(inp3, wflat_ref, b_ref, K):
        # inp3: (Bt, L, Cp) f32; wflat: (K*Cp, Cout) bf16; b: (1, Cout) f32
        pad = (K - 1) // 2
        xb = inp3.astype(jnp.bfloat16)
        zp = jnp.zeros((Bt, pad, Cp), jnp.bfloat16)
        xpad = jnp.concatenate([zp, xb, zp], axis=1)        # (Bt, L+2p, Cp)
        cols = jnp.concatenate(
            [xpad[:, k:k + L, :] for k in range(K)], axis=-1)  # (Bt, L, K*Cp)
        out = jnp.dot(cols.reshape(M, K * Cp), wflat_ref[...],
                      preferred_element_type=jnp.float32)   # (M, Cout) f32
        return out + b_ref[0]

    # x = x + pos_embed(x)                  (Conv1d k=3, pad=1)
    x1 = x.reshape(M, Cp) + conv_im2col(x, pos_w_ref, pos_b_ref, 3)

    # norm1 (eval BN) folded into conv1 (1x1) -> one matmul
    z = jnp.dot(x1.astype(jnp.bfloat16), w1_ref[...],
                preferred_element_type=jnp.float32) + b1_ref[0]

    # attn                                  (Conv1d k=5, pad=2)
    a = conv_im2col(z.reshape(Bt, L, Cp), attn_w_ref, attn_b_ref, 5)

    # conv2 (1x1)
    w = jnp.dot(a.astype(jnp.bfloat16), w2_ref[...],
                preferred_element_type=jnp.float32) + b2_ref[0]

    # residual
    o_ref[...] = (x1 + w).reshape(Bt, L, Cp).astype(o_ref.dtype)


# --------------------------------------------------------------------------
# Host-side parameter preparation: BN fold, lane padding, bf16 cast, im2col
# weight flattening.
# --------------------------------------------------------------------------
def prepare_params(params, C, Cp):
    (pos_w, pos_b, bn_scale, bn_shift, w1, b1, attn_w, attn_b, w2, b2) = params
    # z = (x1*scale + shift) @ w1 + b1 = x1 @ (scale[:,None]*w1) + (shift@w1 + b1)
    w1f = bn_scale[0][:, None] * w1
    b1f = (bn_shift[0] @ w1 + b1[0])[None, :]
    padC = Cp - C
    bf = jnp.bfloat16

    def pad_mat(m):                       # (C, C)    -> (Cp, Cp)
        return jnp.pad(m, ((0, padC), (0, padC)))

    def pad_bias(b):                      # (1, C)    -> (1, Cp)
        return jnp.pad(b, ((0, 0), (0, padC)))

    def pad_conv(w):                      # (K, C, C) -> (K*Cp, Cp)
        K = w.shape[0]
        return jnp.pad(w, ((0, 0), (0, padC), (0, padC))).reshape(K * Cp, Cp)

    return (pad_conv(pos_w).astype(bf), pad_bias(pos_b),
            pad_mat(w1f).astype(bf),    pad_bias(b1f),
            pad_conv(attn_w).astype(bf), pad_bias(attn_b),
            pad_mat(w2).astype(bf),     pad_bias(b2))


def _pick_bt(B, L):
    """Batches per block: target ~512 rows in the MXU M dimension."""
    bt = max(1, min(B, 512 // max(L, 1)))
    while B % bt != 0:
        bt -= 1
    return bt


# --------------------------------------------------------------------------
# Wrapper
# --------------------------------------------------------------------------
def cblock_forward(x, params):
    """x: (B, L, C) float32 (same layout as the torch module input)."""
    B, L, C = x.shape
    Cp = pl.cdiv(C, 128) * 128
    prep = prepare_params(params, C, Cp)
    xp = jnp.pad(x, ((0, 0), (0, 0), (0, Cp - C))) if Cp != C else x

    Bt = _pick_bt(B, L)
    grid = (B // Bt,)

    def const_spec(arr):
        nd = arr.ndim
        return pl.BlockSpec(arr.shape, lambda b, _nd=nd: (0,) * _nd)

    in_specs = [pl.BlockSpec((Bt, L, Cp), lambda b: (b, 0, 0))]
    in_specs += [const_spec(p) for p in prep]
    out_spec = pl.BlockSpec((Bt, L, Cp), lambda b: (b, 0, 0))

    flops = 2 * B * L * Cp * Cp * (3 + 1 + 5 + 1)
    bytes_accessed = int(xp.size) * 4 * 2 + sum(
        int(p.size) * p.dtype.itemsize for p in prep)

    out = pl.pallas_call(
        cblock_kernel,
        out_shape=jax.ShapeDtypeStruct((B, L, Cp), x.dtype),
        grid_spec=pltpu.PrefetchScalarGridSpec(
            num_scalar_prefetch=0,
            grid=grid,
            in_specs=in_specs,
            out_specs=out_spec),
        compiler_params=pltpu.CompilerParams(
            dimension_semantics=("parallel",),
            vmem_limit_bytes=48 * 1024 * 1024),
        cost_estimate=pl.CostEstimate(flops=int(flops), transcendentals=0,
                                      bytes_accessed=int(bytes_accessed)),
    )(xp, *prep)

    return out[:, :, :C] if Cp != C else out


# --------------------------------------------------------------------------
# References
# --------------------------------------------------------------------------
def ref_forward_f32(x, params):
    """Pure-f32 reference of the original math (semantic ground truth)."""
    (pos_w, pos_b, bn_scale, bn_shift, w1, b1, attn_w, attn_b, w2, b2) = params
    L = x.shape[1]

    def conv1d_same(inp, w, b, K):
        pad = (K - 1) // 2
        xpd = jnp.pad(inp, ((0, 0), (pad, pad), (0, 0)))
        out = jnp.zeros(inp.shape[:2] + (w.shape[2],), jnp.float32)
        for k in range(K):
            out = out + jnp.einsum('blc,cd->bld', xpd[:, k:k + L, :], w[k])
        return out + b[0][None, None, :]

    x1 = x + conv1d_same(x, pos_w, pos_b, 3)
    y = x1 * bn_scale[0][None, None, :] + bn_shift[0][None, None, :]
    z = jnp.einsum('blc,cd->bld', y, w1) + b1[0][None, None, :]
    a = conv1d_same(z, attn_w, attn_b, 5)
    w = jnp.einsum('blc,cd->bld', a, w2) + b2[0][None, None, :]
    return x1 + w


def ref_forward_mirrored(x, prep, C, Cp):
    """Mirrors the kernel's bf16/padding path exactly (tight-tolerance check)."""
    (pos_w, pos_b, w1, b1, attn_w, attn_b, w2, b2) = prep
    B, L, _ = x.shape
    xp = jnp.pad(x, ((0, 0), (0, 0), (0, Cp - C)))

    def conv(inp, wflat, b, K):
        pad = (K - 1) // 2
        xb = jnp.pad(inp.astype(jnp.bfloat16), ((0, 0), (pad, pad), (0, 0)))
        cols = jnp.concatenate([xb[:, k:k + L, :] for k in range(K)], axis=-1)
        out = jnp.einsum('blk,kc->blc', cols, wflat,
                         preferred_element_type=jnp.float32)
        return out + b[0][None, None, :]

    x1 = xp + conv(xp, pos_w, pos_b, 3)
    z = jnp.einsum('blc,cd->bld', x1.astype(jnp.bfloat16), w1,
                   preferred_element_type=jnp.float32) + b1[0][None, None, :]
    a = conv(z, attn_w, attn_b, 5)
    w = jnp.einsum('blc,cd->bld', a.astype(jnp.bfloat16), w2,
                   preferred_element_type=jnp.float32) + b2[0][None, None, :]
    return (x1 + w)[:, :, :C]


# --------------------------------------------------------------------------
# Parameter construction
# --------------------------------------------------------------------------
def make_params(key, d_model):
    ks = jax.random.split(key, 12)
    C = d_model
    s = 0.1
    # conv weights stored as (K, C_in, C_out)   (torch Conv1d is (C_out, C_in, K))
    pos_w = s * jax.random.normal(ks[0], (3, C, C), jnp.float32)
    pos_b = s * jax.random.normal(ks[1], (1, C), jnp.float32)
    # BatchNorm1d (eval mode) -> per-channel affine
    gamma = 1.0 + s * jax.random.normal(ks[2], (C,), jnp.float32)
    beta = s * jax.random.normal(ks[3], (C,), jnp.float32)
    run_mean = s * jax.random.normal(ks[4], (C,), jnp.float32)
    run_var = 0.5 + jax.random.uniform(ks[5], (C,), jnp.float32)
    eps = 1e-5
    bn_scale = (gamma / jnp.sqrt(run_var + eps)).reshape(1, C)
    bn_shift = (beta - run_mean * gamma / jnp.sqrt(run_var + eps)).reshape(1, C)
    # 1x1 convs stored as (C_in, C_out)
    w1 = s * jax.random.normal(ks[6], (C, C), jnp.float32)
    b1 = s * jax.random.normal(ks[7], (1, C), jnp.float32)
    attn_w = s * jax.random.normal(ks[8], (5, C, C), jnp.float32)
    attn_b = s * jax.random.normal(ks[9], (1, C), jnp.float32)
    w2 = s * jax.random.normal(ks[10], (C, C), jnp.float32)
    b2 = s * jax.random.normal(ks[11], (1, C), jnp.float32)
    return (pos_w, pos_b, bn_scale, bn_shift, w1, b1, attn_w, attn_b, w2, b2)


if __name__ == "__main__":
    B, L, d_model = 2, 16, 32
    key = jax.random.PRNGKey(0)
    kx, kp = jax.random.split(key)
    x = jax.random.normal(kx, (B, L, d_model), jnp.float32)   # (B, seq, d_model)
    params = make_params(kp, d_model)

    out = jax.block_until_ready(cblock_forward(x, params))
    assert out.shape == (B, L, d_model)

    # Tight check vs a reference that mirrors the kernel's bf16/padding path.
    Cp = pl.cdiv(d_model, 128) * 128
    prep = prepare_params(params, d_model, Cp)
    ref_m = ref_forward_mirrored(x, prep, d_model, Cp)
    err_m = float(jnp.max(jnp.abs(out - ref_m)))
    assert jnp.allclose(out, ref_m, atol=2e-3, rtol=2e-3), err_m

    # Loose sanity check vs the pure-f32 reference (bf16 quantization noise).
    ref_f = ref_forward_f32(x, params)
    rel = float(jnp.linalg.norm(out - ref_f) / jnp.linalg.norm(ref_f))
    assert rel < 3e-2, rel

    print("KERNEL_OK")
</pallas_src>

<mosaic_0001>
module attributes {stable_mosaic.version = 11 : i64} {
  func.func @cblock_kernel(%arg0: i32, %arg1: memref<2x16x128xf32, #tpu.memory_space<vmem>>, %arg2: memref<384x128xbf16, #tpu.memory_space<vmem>>, %arg3: memref<1x128xf32, #tpu.memory_space<vmem>>, %arg4: memref<128x128xbf16, #tpu.memory_space<vmem>>, %arg5: memref<1x128xf32, #tpu.memory_space<vmem>>, %arg6: memref<640x128xbf16, #tpu.memory_space<vmem>>, %arg7: memref<1x128xf32, #tpu.memory_space<vmem>>, %arg8: memref<128x128xbf16, #tpu.memory_space<vmem>>, %arg9: memref<1x128xf32, #tpu.memory_space<vmem>>, %arg10: memref<2x16x128xf32, #tpu.memory_space<vmem>>) attributes {dimension_semantics = [#tpu.dimension_semantics<parallel>], iteration_bounds = array<i64: 1>, scalar_prefetch = 0 : i64, scratch_operands = 0 : i64, tpu.core_type = #tpu.core_type<tc>, window_params = [{transform_indices = @transform_0, window_bounds = array<i64: 2, 16, 128>}, {pipeline_mode = #tpu.pipeline_mode<synchronous>, transform_indices = @transform_1, window_bounds = array<i64: 384, 128>}, {pipeline_mode = #tpu.pipeline_mode<synchronous>, transform_indices = @transform_2, window_bounds = array<i64: 1, 128>}, {pipeline_mode = #tpu.pipeline_mode<synchronous>, transform_indices = @transform_3, window_bounds = array<i64: 128, 128>}, {pipeline_mode = #tpu.pipeline_mode<synchronous>, transform_indices = @transform_4, window_bounds = array<i64: 1, 128>}, {pipeline_mode = #tpu.pipeline_mode<synchronous>, transform_indices = @transform_5, window_bounds = array<i64: 640, 128>}, {pipeline_mode = #tpu.pipeline_mode<synchronous>, transform_indices = @transform_6, window_bounds = array<i64: 1, 128>}, {pipeline_mode = #tpu.pipeline_mode<synchronous>, transform_indices = @transform_7, window_bounds = array<i64: 128, 128>}, {pipeline_mode = #tpu.pipeline_mode<synchronous>, transform_indices = @transform_8, window_bounds = array<i64: 1, 128>}, {transform_indices = @transform_9, window_bounds = array<i64: 2, 16, 128>}]} {
    %c0 = arith.constant 0 : index
    %c0_0 = arith.constant 0 : index
    %c0_1 = arith.constant 0 : index
    %0 = vector.load %arg1[%c0, %c0_0, %c0_1] : memref<2x16x128xf32, #tpu.memory_space<vmem>>, vector<2x16x128xf32>
    %1 = vector.shape_cast %0 : vector<2x16x128xf32> to vector<32x128xf32>
    %2 = arith.truncf %0 : vector<2x16x128xf32> to vector<2x16x128xbf16>
    %cst = arith.constant 0.000000e+00 : bf16
    %3 = vector.broadcast %cst : bf16 to vector<2x1x128xbf16>
    %4 = tpu.concatenate %3, %2, %3 in 1 : vector<2x1x128xbf16>, vector<2x16x128xbf16>, vector<2x1x128xbf16> -> vector<2x18x128xbf16>
    %5 = vector.extract_strided_slice %4 {offsets = [0, 0, 0], sizes = [2, 16, 128], strides = [1, 1, 1]} : vector<2x18x128xbf16> to vector<2x16x128xbf16>
    %6 = vector.extract_strided_slice %4 {offsets = [0, 1, 0], sizes = [2, 16, 128], strides = [1, 1, 1]} : vector<2x18x128xbf16> to vector<2x16x128xbf16>
    %7 = vector.extract_strided_slice %4 {offsets = [0, 2, 0], sizes = [2, 16, 128], strides = [1, 1, 1]} : vector<2x18x128xbf16> to vector<2x16x128xbf16>
    %8 = tpu.concatenate %5, %6, %7 in 2 : vector<2x16x128xbf16>, vector<2x16x128xbf16>, vector<2x16x128xbf16> -> vector<2x16x384xbf16>
    %9 = vector.shape_cast %8 : vector<2x16x384xbf16> to vector<32x384xbf16>
    %c0_2 = arith.constant 0 : index
    %c0_3 = arith.constant 0 : index
    %10 = vector.load %arg2[%c0_2, %c0_3] : memref<384x128xbf16, #tpu.memory_space<vmem>>, vector<384x128xbf16>
    %cst_4 = arith.constant dense<0.000000e+00> : vector<32x128xf32>
    %11 = tpu.matmul %9, %10, %cst_4 {dimension_numbers = #tpu.dot_dimension_numbers<[1], [0], [0], [1], [0, 0, 1, 1], [], []>} : vector<32x384xbf16>, vector<384x128xbf16>, vector<32x128xf32> -> vector<32x128xf32>
    %c0_5 = arith.constant 0 : index
    %c0_6 = arith.constant 0 : index
    %12 = vector.load %arg3[%c0_5, %c0_6] : memref<1x128xf32, #tpu.memory_space<vmem>>, vector<1x128xf32>
    %13 = vector.shape_cast %12 : vector<1x128xf32> to vector<128xf32>
    %14 = vector.shape_cast %13 : vector<128xf32> to vector<1x128xf32>
    %15 = vector.broadcast %14 : vector<1x128xf32> to vector<32x128xf32>
    %16 = arith.addf %11, %15 : vector<32x128xf32>
    %17 = arith.addf %1, %16 : vector<32x128xf32>
    %18 = arith.truncf %17 : vector<32x128xf32> to vector<32x128xbf16>
    %c0_7 = arith.constant 0 : index
    %c0_8 = arith.constant 0 : index
    %19 = vector.load %arg4[%c0_7, %c0_8] : memref<128x128xbf16, #tpu.memory_space<vmem>>, vector<128x128xbf16>
    %cst_9 = arith.constant dense<0.000000e+00> : vector<32x128xf32>
    %20 = tpu.matmul %18, %19, %cst_9 {dimension_numbers = #tpu.dot_dimension_numbers<[1], [0], [0], [1], [0, 0, 1, 1], [], []>} : vector<32x128xbf16>, vector<128x128xbf16>, vector<32x128xf32> -> vector<32x128xf32>
    %c0_10 = arith.constant 0 : index
    %c0_11 = arith.constant 0 : index
    %21 = vector.load %arg5[%c0_10, %c0_11] : memref<1x128xf32, #tpu.memory_space<vmem>>, vector<1x128xf32>
    %22 = vector.shape_cast %21 : vector<1x128xf32> to vector<128xf32>
    %23 = vector.shape_cast %22 : vector<128xf32> to vector<1x128xf32>
    %24 = vector.broadcast %23 : vector<1x128xf32> to vector<32x128xf32>
    %25 = arith.addf %20, %24 : vector<32x128xf32>
    %26 = vector.shape_cast %25 : vector<32x128xf32> to vector<2x16x128xf32>
    %27 = arith.truncf %26 : vector<2x16x128xf32> to vector<2x16x128xbf16>
    %cst_12 = arith.constant 0.000000e+00 : bf16
    %28 = vector.broadcast %cst_12 : bf16 to vector<2x2x128xbf16>
    %29 = tpu.concatenate %28, %27, %28 in 1 : vector<2x2x128xbf16>, vector<2x16x128xbf16>, vector<2x2x128xbf16> -> vector<2x20x128xbf16>
    %30 = vector.extract_strided_slice %29 {offsets = [0, 0, 0], sizes = [2, 16, 128], strides = [1, 1, 1]} : vector<2x20x128xbf16> to vector<2x16x128xbf16>
    %31 = vector.extract_strided_slice %29 {offsets = [0, 1, 0], sizes = [2, 16, 128], strides = [1, 1, 1]} : vector<2x20x128xbf16> to vector<2x16x128xbf16>
    %32 = vector.extract_strided_slice %29 {offsets = [0, 2, 0], sizes = [2, 16, 128], strides = [1, 1, 1]} : vector<2x20x128xbf16> to vector<2x16x128xbf16>
    %33 = vector.extract_strided_slice %29 {offsets = [0, 3, 0], sizes = [2, 16, 128], strides = [1, 1, 1]} : vector<2x20x128xbf16> to vector<2x16x128xbf16>
    %34 = vector.extract_strided_slice %29 {offsets = [0, 4, 0], sizes = [2, 16, 128], strides = [1, 1, 1]} : vector<2x20x128xbf16> to vector<2x16x128xbf16>
    %35 = tpu.concatenate %30, %31, %32, %33, %34 in 2 : vector<2x16x128xbf16>, vector<2x16x128xbf16>, vector<2x16x128xbf16>, vector<2x16x128xbf16>, vector<2x16x128xbf16> -> vector<2x16x640xbf16>
    %36 = vector.shape_cast %35 : vector<2x16x640xbf16> to vector<32x640xbf16>
    %c0_13 = arith.constant 0 : index
    %c0_14 = arith.constant 0 : index
    %37 = vector.load %arg6[%c0_13, %c0_14] : memref<640x128xbf16, #tpu.memory_space<vmem>>, vector<640x128xbf16>
    %cst_15 = arith.constant dense<0.000000e+00> : vector<32x128xf32>
    %38 = tpu.matmul %36, %37, %cst_15 {dimension_numbers = #tpu.dot_dimension_numbers<[1], [0], [0], [1], [0, 0, 1, 1], [], []>} : vector<32x640xbf16>, vector<640x128xbf16>, vector<32x128xf32> -> vector<32x128xf32>
    %c0_16 = arith.constant 0 : index
    %c0_17 = arith.constant 0 : index
    %39 = vector.load %arg7[%c0_16, %c0_17] : memref<1x128xf32, #tpu.memory_space<vmem>>, vector<1x128xf32>
    %40 = vector.shape_cast %39 : vector<1x128xf32> to vector<128xf32>
    %41 = vector.shape_cast %40 : vector<128xf32> to vector<1x128xf32>
    %42 = vector.broadcast %41 : vector<1x128xf32> to vector<32x128xf32>
    %43 = arith.addf %38, %42 : vector<32x128xf32>
    %44 = arith.truncf %43 : vector<32x128xf32> to vector<32x128xbf16>
    %c0_18 = arith.constant 0 : index
    %c0_19 = arith.constant 0 : index
    %45 = vector.load %arg8[%c0_18, %c0_19] : memref<128x128xbf16, #tpu.memory_space<vmem>>, vector<128x128xbf16>
    %cst_20 = arith.constant dense<0.000000e+00> : vector<32x128xf32>
    %46 = tpu.matmul %44, %45, %cst_20 {dimension_numbers = #tpu.dot_dimension_numbers<[1], [0], [0], [1], [0, 0, 1, 1], [], []>} : vector<32x128xbf16>, vector<128x128xbf16>, vector<32x128xf32> -> vector<32x128xf32>
    %c0_21 = arith.constant 0 : index
    %c0_22 = arith.constant 0 : index
    %47 = vector.load %arg9[%c0_21, %c0_22] : memref<1x128xf32, #tpu.memory_space<vmem>>, vector<1x128xf32>
    %48 = vector.shape_cast %47 : vector<1x128xf32> to vector<128xf32>
    %49 = vector.shape_cast %48 : vector<128xf32> to vector<1x128xf32>
    %50 = vector.broadcast %49 : vector<1x128xf32> to vector<32x128xf32>
    %51 = arith.addf %46, %50 : vector<32x128xf32>
    %52 = arith.addf %17, %51 : vector<32x128xf32>
    %53 = vector.shape_cast %52 : vector<32x128xf32> to vector<2x16x128xf32>
    %c0_23 = arith.constant 0 : index
    %c0_24 = arith.constant 0 : index
    %c0_25 = arith.constant 0 : index
    %54 = vector.load %arg10[%c0_23, %c0_24, %c0_25] : memref<2x16x128xf32, #tpu.memory_space<vmem>>, vector<2x16x128xf32>
    tpu.vector_store %arg10[%c0_23, %c0_24, %c0_25], %53 {strides = array<i32>} : memref<2x16x128xf32, #tpu.memory_space<vmem>>, vector<2x16x128xf32>,
    return
  }
  func.func @transform_0(%arg0: i32) -> (i32, i32, i32) {
    %c0_i32 = arith.constant 0 : i32
    %c0_i32_0 = arith.constant 0 : i32
    %c0_i32_1 = arith.constant 0 : i32
    return %arg0, %c0_i32, %c0_i32_0 : i32, i32, i32
  }
  func.func @transform_1(%arg0: i32) -> (i32, i32) {
    %c0_i32 = arith.constant 0 : i32
    %c0_i32_0 = arith.constant 0 : i32
    %c0_i32_1 = arith.constant 0 : i32
    return %c0_i32, %c0_i32_0 : i32, i32
  }
  func.func @transform_2(%arg0: i32) -> (i32, i32) {
    %c0_i32 = arith.constant 0 : i32
    %c0_i32_0 = arith.constant 0 : i32
    %c0_i32_1 = arith.constant 0 : i32
    return %c0_i32, %c0_i32_0 : i32, i32
  }
  func.func @transform_3(%arg0: i32) -> (i32, i32) {
    %c0_i32 = arith.constant 0 : i32
    %c0_i32_0 = arith.constant 0 : i32
    %c0_i32_1 = arith.constant 0 : i32
    return %c0_i32, %c0_i32_0 : i32, i32
  }
  func.func @transform_4(%arg0: i32) -> (i32, i32) {
    %c0_i32 = arith.constant 0 : i32
    %c0_i32_0 = arith.constant 0 : i32
    %c0_i32_1 = arith.constant 0 : i32
    return %c0_i32, %c0_i32_0 : i32, i32
  }
  func.func @transform_5(%arg0: i32) -> (i32, i32) {
    %c0_i32 = arith.constant 0 : i32
    %c0_i32_0 = arith.constant 0 : i32
    %c0_i32_1 = arith.constant 0 : i32
    return %c0_i32, %c0_i32_0 : i32, i32
  }
  func.func @transform_6(%arg0: i32) -> (i32, i32) {
    %c0_i32 = arith.constant 0 : i32
    %c0_i32_0 = arith.constant 0 : i32
    %c0_i32_1 = arith.constant 0 : i32
    return %c0_i32, %c0_i32_0 : i32, i32
  }
  func.func @transform_7(%arg0: i32) -> (i32, i32) {
    %c0_i32 = arith.constant 0 : i32
    %c0_i32_0 = arith.constant 0 : i32
    %c0_i32_1 = arith.constant 0 : i32
    return %c0_i32, %c0_i32_0 : i32, i32
  }
  func.func @transform_8(%arg0: i32) -> (i32, i32) {
    %c0_i32 = arith.constant 0 : i32
    %c0_i32_0 = arith.constant 0 : i32
    %c0_i32_1 = arith.constant 0 : i32
    return %c0_i32, %c0_i32_0 : i32, i32
  }
  func.func @transform_9(%arg0: i32) -> (i32, i32, i32) {
    %c0_i32 = arith.constant 0 : i32
    %c0_i32_0 = arith.constant 0 : i32
    %c0_i32_1 = arith.constant 0 : i32
    return %arg0, %c0_i32, %c0_i32_0 : i32, i32, i32
  }
}

</mosaic_0001>

<llo_original>
// kernel: tpu_custom_call.1
$region0: #{tpu_custom_call.1}
  #allocation0 [shape = 'u32[]', space=smem, size = 0x4, offset = 0x4, fixed_abs, tag = 'smem constant byte address 0x4 - core index']
  #allocation1 [shape = 'u32[144,128]{1,0:T(1,128)}', space=vmem, size = 0x12000, scoped, tag = 'internal scratch']
  %s0 = inlined_call_operand.hbm [shape: f32[2,16,128], index: 0, kind: input, shape index: {}]
  %s1 = inlined_call_operand.hbm [shape: bf16[384,128], index: 1, kind: input, shape index: {}]
  %s2 = inlined_call_operand.vmem [shape: f32[1,128], index: 2, kind: input, shape index: {}]
  %s3 = inlined_call_operand.hbm [shape: bf16[128,128], index: 3, kind: input, shape index: {}]
  %s4 = inlined_call_operand.vmem [shape: f32[1,128], index: 4, kind: input, shape index: {}]
  %s5 = inlined_call_operand.hbm [shape: bf16[640,128], index: 5, kind: input, shape index: {}]
  %s6 = inlined_call_operand.vmem [shape: f32[1,128], index: 6, kind: input, shape index: {}]
  %s7 = inlined_call_operand.hbm [shape: bf16[128,128], index: 7, kind: input, shape index: {}]
  %s8 = inlined_call_operand.vmem [shape: f32[1,128], index: 8, kind: input, shape index: {}]
  %s9 = inlined_call_operand.hbm [shape: f32[2,16,128], index: 9, kind: output, shape index: {}]
  %s10 = sld [smem:[#allocation0]]
  $region66: #{tpu_custom_call.1} parent=0
    _
  %s12 = ssub.s32 1, %s10
  %s13 = scalar_select 0, %s12, %s10
  $region1: #{tpu_custom_call.1} parent=0
    #allocation2 [shape = 'u8[16384]{0}', space=vmem, size = 0x4000, scoped, tag = 'input window, operand 0, single buffered']
    #allocation3 [shape = 's32[1]{0}', space=sflag, size = 0x4, scoped, tag = 'scoped memory for tpu_custom_call.1']
    #allocation4 [shape = 's32[1]{0}', space=sflag, size = 0x4, scoped, tag = 'scoped memory for tpu_custom_call.1']
    #allocation5 [shape = 'u8[98304]{0}', space=vmem, size = 0x18000, scoped, tag = 'input window, operand 1, single buffered']
    #allocation6 [shape = 's32[1]{0}', space=sflag, size = 0x4, scoped, tag = 'scoped memory for tpu_custom_call.1']
    #allocation7 [shape = 'u8[32768]{0}', space=vmem, size = 0x8000, scoped, tag = 'input window, operand 3, single buffered']
    #allocation8 [shape = 'u8[163840]{0}', space=vmem, size = 0x28000, scoped, tag = 'input window, operand 5, single buffered']
    #allocation9 [shape = 's32[1]{0}', space=sflag, size = 0x4, scoped, tag = 'scoped memory for tpu_custom_call.1']
    #allocation10 [shape = 'u8[32768]{0}', space=vmem, size = 0x8000, scoped, tag = 'input window, operand 7, single buffered']
    #allocation11 [shape = 'u8[16384]{0}', space=vmem, size = 0x4000, scoped, tag = 'output window, operand 0, single buffered']
    %14 = vsyncpa [#allocation3], 0
    %15 = vsyncpa [#allocation6], 0
    %16 = vsyncpa [#allocation9], 0
    %17 = vsyncpa [#allocation4], 0
    // Predicated region
    $region2: #{tpu_custom_call.1} parent=1 // pred_check
      _
    $region3: #{tpu_custom_call.1} parent=1 // pred_check_branch
      %19 = sbr.rel (0) target = $region5
    $region4: #{tpu_custom_call.1} parent=1 // pred_region
      %s21 = ssub.s32 512, 512
      %22 = vsyncadd [#allocation3], %s21
      %s23 = sshll.u32 [#allocation2], 4
      %s24 = int_to_ptr.vmem [resolvable:$true] %s23
      %29 = dma.hbm_to_vmem [thread:$0]  %s0, 512, %s24, [#allocation3], 128, 128, 8
    $region5: #{tpu_custom_call.1} parent=1 // pred_fallthru
      _
    // Predicated region
    $region6: #{tpu_custom_call.1} parent=1 // pred_check
      _
    $region7: #{tpu_custom_call.1} parent=1 // pred_check_branch
      %31 = sbr.rel (0) target = $region9
    $region8: #{tpu_custom_call.1} parent=1 // pred_region
      %s33 = ssub.s32 3072, 3072
      %34 = vsyncadd [#allocation6], %s33
      %s35 = sshll.u32 [#allocation5], 4
      %s36 = int_to_ptr.vmem [resolvable:$true] %s35
      %41 = dma.hbm_to_vmem [thread:$0]  %s1, 3072, %s36, [#allocation6], 64, 64, 4
    $region9: #{tpu_custom_call.1} parent=1 // pred_fallthru
      _
    // Predicated region
    $region10: #{tpu_custom_call.1} parent=1 // pred_check
      _
    $region11: #{tpu_custom_call.1} parent=1 // pred_check_branch
      %43 = sbr.rel (0) target = $region13
    $region12: #{tpu_custom_call.1} parent=1 // pred_region
      _
    $region13: #{tpu_custom_call.1} parent=1 // pred_fallthru
      _
    // Predicated region
    $region14: #{tpu_custom_call.1} parent=1 // pred_check
      _
    $region15: #{tpu_custom_call.1} parent=1 // pred_check_branch
      %45 = sbr.rel (0) target = $region17
    $region16: #{tpu_custom_call.1} parent=1 // pred_region
      %s47 = ssub.s32 1024, 1024
      %48 = vsyncadd [#allocation6], %s47
      %s49 = sshll.u32 [#allocation7], 4
      %s50 = int_to_ptr.vmem [resolvable:$true] %s49
      %55 = dma.hbm_to_vmem [thread:$0]  %s3, 1024, %s50, [#allocation6], 64, 64, 4
    $region17: #{tpu_custom_call.1} parent=1 // pred_fallthru
      _
    // Predicated region
    $region18: #{tpu_custom_call.1} parent=1 // pred_check
      _
    $region19: #{tpu_custom_call.1} parent=1 // pred_check_branch
      %57 = sbr.rel (0) target = $region21
    $region20: #{tpu_custom_call.1} parent=1 // pred_region
      _
    $region21: #{tpu_custom_call.1} parent=1 // pred_fallthru
      _
    // Predicated region
    $region22: #{tpu_custom_call.1} parent=1 // pred_check
      _
    $region23: #{tpu_custom_call.1} parent=1 // pred_check_branch
      %59 = sbr.rel (0) target = $region25
    $region24: #{tpu_custom_call.1} parent=1 // pred_region
      %s61 = ssub.s32 5120, 5120
      %62 = vsyncadd [#allocation9], %s61
      %s63 = sshll.u32 [#allocation8], 4
      %s64 = int_to_ptr.vmem [resolvable:$true] %s63
      %69 = dma.hbm_to_vmem [thread:$0]  %s5, 5120, %s64, [#allocation9], 64, 64, 4
    $region25: #{tpu_custom_call.1} parent=1 // pred_fallthru
      _
    // Predicated region
    $region26: #{tpu_custom_call.1} parent=1 // pred_check
      _
    $region27: #{tpu_custom_call.1} parent=1 // pred_check_branch
      %71 = sbr.rel (0) target = $region29
    $region28: #{tpu_custom_call.1} parent=1 // pred_region
      _
    $region29: #{tpu_custom_call.1} parent=1 // pred_fallthru
      _
    // Predicated region
    $region30: #{tpu_custom_call.1} parent=1 // pred_check
      _
    $region31: #{tpu_custom_call.1} parent=1 // pred_check_branch
      %73 = sbr.rel (0) target = $region33
    $region32: #{tpu_custom_call.1} parent=1 // pred_region
      %s75 = ssub.s32 1024, 1024
      %76 = vsyncadd [#allocation9], %s75
      %s77 = sshll.u32 [#allocation10], 4
      %s78 = int_to_ptr.vmem [resolvable:$true] %s77
      %83 = dma.hbm_to_vmem [thread:$0]  %s7, 1024, %s78, [#allocation9], 64, 64, 4
    $region33: #{tpu_custom_call.1} parent=1 // pred_fallthru
      _
    // Predicated region
    $region34: #{tpu_custom_call.1} parent=1 // pred_check
      _
    $region35: #{tpu_custom_call.1} parent=1 // pred_check_branch
      %85 = sbr.rel (0) target = $region37
    $region36: #{tpu_custom_call.1} parent=1 // pred_region
      _
    $region37: #{tpu_custom_call.1} parent=1 // pred_fallthru
      _
    // Predicated region
    $region38: #{tpu_custom_call.1} parent=1 // pred_check
      _
    $region39: #{tpu_custom_call.1} parent=1 // pred_check_branch
      %87 = sbr.rel (0) target = $region41
    $region40: #{tpu_custom_call.1} parent=1 // pred_region
      %88 = dma.done [#allocation3], 512
    $region41: #{tpu_custom_call.1} parent=1 // pred_fallthru
      _
    // Predicated region
    $region42: #{tpu_custom_call.1} parent=1 // pred_check
      _
    $region43: #{tpu_custom_call.1} parent=1 // pred_check_branch
      %90 = sbr.rel (0) target = $region45
    $region44: #{tpu_custom_call.1} parent=1 // pred_region
      %91 = dma.done [#allocation6], 3072
    $region45: #{tpu_custom_call.1} parent=1 // pred_fallthru
      _
    // Predicated region
    $region46: #{tpu_custom_call.1} parent=1 // pred_check
      _
    $region47: #{tpu_custom_call.1} parent=1 // pred_check_branch
      %93 = sbr.rel (0) target = $region49
    $region48: #{tpu_custom_call.1} parent=1 // pred_region
      %94 = dma.done [#allocation6], 1024
    $region49: #{tpu_custom_call.1} parent=1 // pred_fallthru
      _
    // Predicated region
    $region50: #{tpu_custom_call.1} parent=1 // pred_check
      _
    $region51: #{tpu_custom_call.1} parent=1 // pred_check_branch
      %96 = sbr.rel (0) target = $region53
    $region52: #{tpu_custom_call.1} parent=1 // pred_region
      %97 = dma.done [#allocation9], 5120
    $region53: #{tpu_custom_call.1} parent=1 // pred_fallthru
      _
    // Predicated region
    $region54: #{tpu_custom_call.1} parent=1 // pred_check
      _
    $region55: #{tpu_custom_call.1} parent=1 // pred_check_branch
      %99 = sbr.rel (0) target = $region57
    $region56: #{tpu_custom_call.1} parent=1 // pred_region
      %100 = dma.done [#allocation9], 1024
    $region57: #{tpu_custom_call.1} parent=1 // pred_fallthru
      _
    %v102 = vld [vmem:[#allocation2] sm:$0xff]
    %v103 = vld [vmem:[#allocation2 + $0x8] sm:$0xff]
    %v104 = vld [vmem:[#allocation2 + $0x10] sm:$0xff]
    %v105 = vld [vmem:[#allocation2 + $0x18] sm:$0xff]
    %v106 = vpack.c.bf16 %v103, %v102
    %v107 = vpack.c.bf16 %v105, %v104
    %v109 = vshrl.u32 %v106, 16
    %v111 = vrot.slane %v109, 7
    %v112 = vshll.u32 %v106, 16
    %v114 = vor.u32 %v111, %v112
    %v116 = vshrl.u32 %v107, 16
    %v118 = vrot.slane %v116, 7
    %v119 = vshll.u32 %v107, 16
    %v121 = vor.u32 %v118, %v119
    %vm126 = vcmask 1040384
    %vm127 = vsmask.f32 256
    %vm128 = vmand %vm126, %vm127
    %v129 = vsel %vm128, 0, %v114
    %v130 = vsel %vm128, 0, %v121
    %v131 = vsel %vm128, %v111, 0
    %v132 = vsel %vm128, %v118, 0
    %vm133 = vsmask.f32 7424
    %v135 = vshrl.u32 %v129, 16
    %v137 = vshll.u32 %v129, 16
    %v139 = vrot.slane %v137, 1
    %v140 = vor.u32 %v135, %v139
    %v142 = vshll.u32 %v131, 16
    %v144 = vrot.slane %v142, 1
    %v145 = vsel %vm133, %v140, %v144
    %v147 = vshrl.u32 %v130, 16
    %v149 = vshll.u32 %v130, 16
    %v151 = vrot.slane %v149, 1
    %v152 = vor.u32 %v147, %v151
    %v154 = vshll.u32 %v132, 16
    %v156 = vrot.slane %v154, 1
    %v157 = vsel %vm133, %v152, %v156
    %vm164 = vcmask 1046528
    %v165 = vrot.slane %v129, 1
    %v166 = vrot.slane %v131, 1
    %v167 = vsel %vm164, %v165, %v166
    %v168 = vrot.slane %v130, 1
    %v169 = vrot.slane %v132, 1
    %v170 = vsel %vm164, %v168, %v169
    %v173 = vld [vmem:[#allocation5] sm:$0xf]
    %v174 = vld [vmem:[#allocation5 + $0x4] sm:$0xf]
    %v175 = vld [vmem:[#allocation5 + $0x8] sm:$0xf]
    %v176 = vld [vmem:[#allocation5 + $0xc] sm:$0xf]
    %v177 = vld [vmem:[#allocation5 + $0x10] sm:$0xf]
    %v178 = vld [vmem:[#allocation5 + $0x14] sm:$0xf]
    %v179 = vld [vmem:[#allocation5 + $0x18] sm:$0xf]
    %v180 = vld [vmem:[#allocation5 + $0x1c] sm:$0xf]
    %v181 = vld [vmem:[#allocation5 + $0x20] sm:$0xf]
    %v182 = vld [vmem:[#allocation5 + $0x24] sm:$0xf]
    %v183 = vld [vmem:[#allocation5 + $0x28] sm:$0xf]
    %v184 = vld [vmem:[#allocation5 + $0x2c] sm:$0xf]
    %v185 = vld [vmem:[#allocation5 + $0x30] sm:$0xf]
    %v186 = vld [vmem:[#allocation5 + $0x34] sm:$0xf]
    %v187 = vld [vmem:[#allocation5 + $0x38] sm:$0xf]
    %v188 = vld [vmem:[#allocation5 + $0x3c] sm:$0xf]
    %v189 = vld [vmem:[#allocation5 + $0x40] sm:$0xf]
    %v190 = vld [vmem:[#allocation5 + $0x44] sm:$0xf]
    %v191 = vld [vmem:[#allocation5 + $0x48] sm:$0xf]
    %v192 = vld [vmem:[#allocation5 + $0x4c] sm:$0xf]
    %v193 = vld [vmem:[#allocation5 + $0x50] sm:$0xf]
    %v194 = vld [vmem:[#allocation5 + $0x54] sm:$0xf]
    %v195 = vld [vmem:[#allocation5 + $0x58] sm:$0xf]
    %v196 = vld [vmem:[#allocation5 + $0x5c] sm:$0xf]
    %v197 = vld [vmem:[#allocation5 + $0x60] sm:$0xf]
    %v198 = vld [vmem:[#allocation5 + $0x64] sm:$0xf]
    %v199 = vld [vmem:[#allocation5 + $0x68] sm:$0xf]
    %v200 = vld [vmem:[#allocation5 + $0x6c] sm:$0xf]
    %v201 = vld [vmem:[#allocation5 + $0x70] sm:$0xf]
    %v202 = vld [vmem:[#allocation5 + $0x74] sm:$0xf]
    %v203 = vld [vmem:[#allocation5 + $0x78] sm:$0xf]
    %v204 = vld [vmem:[#allocation5 + $0x7c] sm:$0xf]
    %v205 = vld [vmem:[#allocation5 + $0x80] sm:$0xf]
    %v206 = vld [vmem:[#allocation5 + $0x84] sm:$0xf]
    %v207 = vld [vmem:[#allocation5 + $0x88] sm:$0xf]
    %v208 = vld [vmem:[#allocation5 + $0x8c] sm:$0xf]
    %v209 = vld [vmem:[#allocation5 + $0x90] sm:$0xf]
    %v210 = vld [vmem:[#allocation5 + $0x94] sm:$0xf]
    %v211 = vld [vmem:[#allocation5 + $0x98] sm:$0xf]
    %v212 = vld [vmem:[#allocation5 + $0x9c] sm:$0xf]
    %v213 = vld [vmem:[#allocation5 + $0xa0] sm:$0xf]
    %v214 = vld [vmem:[#allocation5 + $0xa4] sm:$0xf]
    %v215 = vld [vmem:[#allocation5 + $0xa8] sm:$0xf]
    %v216 = vld [vmem:[#allocation5 + $0xac] sm:$0xf]
    %v217 = vld [vmem:[#allocation5 + $0xb0] sm:$0xf]
    %v218 = vld [vmem:[#allocation5 + $0xb4] sm:$0xf]
    %v219 = vld [vmem:[#allocation5 + $0xb8] sm:$0xf]
    %v220 = vld [vmem:[#allocation5 + $0xbc] sm:$0xf]
    %v221 = vld [vmem:[%s2] sm:$0x1]
    %v223 = vlaneseq
    %v224 = vshrl.u32 %v223, 7
    %v225 = vsub.s32 0, %v224
    %v226 = vrot.slane %v221, %v225
    %v276 = vunpack.c.l.b16 %v173
    %v277 = vunpack.c.l.b16 %v174
    %v278 = vunpack.c.l.b16 %v175
    %v279 = vunpack.c.l.b16 %v176
    %v280 = vunpack.c.l.b16 %v177
    %v281 = vunpack.c.l.b16 %v178
    %v282 = vunpack.c.l.b16 %v179
    %v283 = vunpack.c.l.b16 %v180
    %v284 = vunpack.c.l.b16 %v181
    %v285 = vunpack.c.l.b16 %v182
    %v286 = vunpack.c.l.b16 %v183
    %v287 = vunpack.c.l.b16 %v184
    %v288 = vunpack.c.l.b16 %v185
    %v289 = vunpack.c.l.b16 %v186
    %v290 = vunpack.c.l.b16 %v187
    %v291 = vunpack.c.l.b16 %v188
    %v292 = vunpack.c.l.b16 %v189
    %v293 = vunpack.c.l.b16 %v190
    %v294 = vunpack.c.l.b16 %v191
    %v295 = vunpack.c.l.b16 %v192
    %v296 = vunpack.c.l.b16 %v193
    %v297 = vunpack.c.l.b16 %v194
    %v298 = vunpack.c.l.b16 %v195
    %v299 = vunpack.c.l.b16 %v196
    %v300 = vunpack.c.l.b16 %v197
    %v301 = vunpack.c.l.b16 %v198
    %v302 = vunpack.c.l.b16 %v199
    %v303 = vunpack.c.l.b16 %v200
    %v304 = vunpack.c.l.b16 %v201
    %v305 = vunpack.c.l.b16 %v202
    %v306 = vunpack.c.l.b16 %v203
    %v307 = vunpack.c.l.b16 %v204
    %v308 = vunpack.c.l.b16 %v205
    %v309 = vunpack.c.l.b16 %v206
    %v310 = vunpack.c.l.b16 %v207
    %v311 = vunpack.c.l.b16 %v208
    %v312 = vunpack.c.l.b16 %v209
    %v313 = vunpack.c.l.b16 %v210
    %v314 = vunpack.c.l.b16 %v211
    %v315 = vunpack.c.l.b16 %v212
    %v316 = vunpack.c.l.b16 %v213
    %v317 = vunpack.c.l.b16 %v214
    %v318 = vunpack.c.l.b16 %v215
    %v319 = vunpack.c.l.b16 %v216
    %v320 = vunpack.c.l.b16 %v217
    %v321 = vunpack.c.l.b16 %v218
    %v322 = vunpack.c.l.b16 %v219
    %v323 = vunpack.c.l.b16 %v220
    %v324 = vpack.c.b16 %v277, %v276
    %v325 = vpack.c.b16 %v279, %v278
    %v326 = vpack.c.b16 %v281, %v280
    %v327 = vpack.c.b16 %v283, %v282
    %v328 = vpack.c.b16 %v285, %v284
    %v329 = vpack.c.b16 %v287, %v286
    %v330 = vpack.c.b16 %v289, %v288
    %v331 = vpack.c.b16 %v291, %v290
    %v332 = vpack.c.b16 %v293, %v292
    %v333 = vpack.c.b16 %v295, %v294
    %v334 = vpack.c.b16 %v297, %v296
    %v335 = vpack.c.b16 %v299, %v298
    %v336 = vpack.c.b16 %v301, %v300
    %v337 = vpack.c.b16 %v303, %v302
    %v338 = vpack.c.b16 %v305, %v304
    %v339 = vpack.c.b16 %v307, %v306
    %v340 = vpack.c.b16 %v309, %v308
    %v341 = vpack.c.b16 %v311, %v310
    %v342 = vpack.c.b16 %v313, %v312
    %v343 = vpack.c.b16 %v315, %v314
    %v344 = vpack.c.b16 %v317, %v316
    %v345 = vpack.c.b16 %v319, %v318
    %v346 = vpack.c.b16 %v321, %v320
    %v347 = vpack.c.b16 %v323, %v322
    %372 = vmatprep.subr.bf16.mxu0 0
    %373 = vmatpush1.bf16.msra.mxu0 %v324
    %374 = vmatprep.subr.bf16.mxu0 0
    %375 = vmatpush1.bf16.msra.mxu0 %v325
    %376 = vmatprep.subr.bf16.mxu0 0
    %377 = vmatpush1.bf16.msra.mxu0 %v326
    %378 = vmatprep.subr.bf16.mxu0 0
    %379 = vmatpush1.bf16.msra.mxu0 %v327
    %380 = vmatprep.subr.bf16.mxu0 0
    %381 = vmatpush1.bf16.msra.mxu0 %v328
    %382 = vmatprep.subr.bf16.mxu0 0
    %383 = vmatpush1.bf16.msra.mxu0 %v329
    %384 = vmatprep.subr.bf16.mxu0 0
    %385 = vmatpush1.bf16.msra.mxu0 %v330
    %386 = vmatprep.subr.bf16.mxu0 0
    %387 = vmatpush1.bf16.msra.mxu0 %v331
    %388 = vmatprep.subr.bf16.mxu0 0
    %389 = vmatpush1.bf16.msra.mxu0 %v332
    %390 = vmatprep.subr.bf16.mxu0 0
    %391 = vmatpush1.bf16.msra.mxu0 %v333
    %392 = vmatprep.subr.bf16.mxu0 0
    %393 = vmatpush1.bf16.msra.mxu0 %v334
    %394 = vmatprep.subr.bf16.mxu0 0
    %395 = vmatpush1.bf16.msra.mxu0 %v335
    %396 = vmatprep.subr.bf16.mxu0 0
    %397 = vmatpush1.bf16.msra.mxu0 %v336
    %398 = vmatprep.subr.bf16.mxu0 0
    %399 = vmatpush1.bf16.msra.mxu0 %v337
    %400 = vmatprep.subr.bf16.mxu0 0
    %401 = vmatpush1.bf16.msra.mxu0 %v338
    %402 = vmatprep.subr.bf16.mxu0 0
    %403 = vmatpush1.bf16.msra.mxu0 %v339
    %404 = vmatprep.mubr.bf16.mxu0 %v145
    %405 = vmatmul.mubr.bf16.gmra.mrb[0].mxu0 %v129
    %v406 = vpop.f32.mrb[0].mxu0
    %v407 = vadd.f32 %v226, %v406
    %v408 = vpop.f32.mrb[0].mxu0
    %v409 = vpop.f32.mrb[0].mxu0
    %v410 = vadd.f32 %v226, %v409
    %v411 = vpop.f32.mrb[0].mxu0
    %412 = vmatprep.mubr.bf16.mxu0 %v157
    %413 = vmatmul.mubr.bf16.gmra.mrb[0].mxu0 %v130
    %v414 = vpop.f32.mrb[0].mxu0
    %v415 = vadd.f32 %v226, %v414
    %v416 = vpop.f32.mrb[0].mxu0
    %v417 = vpop.f32.mrb[0].mxu0
    %v418 = vadd.f32 %v226, %v417
    %v419 = vpop.f32.mrb[0].mxu0
    %420 = vdwg.mxu0
    %421 = vmatprep.subr.bf16.mxu0 0
    %422 = vmatpush1.bf16.msra.mxu0 %v340
    %423 = vmatprep.subr.bf16.mxu0 0
    %424 = vmatpush1.bf16.msra.mxu0 %v341
    %425 = vmatprep.subr.bf16.mxu0 0
    %426 = vmatpush1.bf16.msra.mxu0 %v342
    %427 = vmatprep.subr.bf16.mxu0 0
    %428 = vmatpush1.bf16.msra.mxu0 %v343
    %429 = vmatprep.subr.bf16.mxu0 0
    %430 = vmatpush1.bf16.msra.mxu0 %v344
    %431 = vmatprep.subr.bf16.mxu0 0
    %432 = vmatpush1.bf16.msra.mxu0 %v345
    %433 = vmatprep.subr.bf16.mxu0 0
    %434 = vmatpush1.bf16.msra.mxu0 %v346
    %435 = vmatprep.subr.bf16.mxu0 0
    %436 = vmatpush1.bf16.msra.mxu0 %v347
    %437 = vmatprep.subr.bf16.mxu0 0
    %438 = vmatpush1.bf16.msra.mxu0 0
    %439 = vmatprep.subr.bf16.mxu0 0
    %440 = vmatpush1.bf16.msra.mxu0 0
    %441 = vmatprep.subr.bf16.mxu0 0
    %442 = vmatpush1.bf16.msra.mxu0 0
    %443 = vmatprep.subr.bf16.mxu0 0
    %444 = vmatpush1.bf16.msra.mxu0 0
    %445 = vmatprep.subr.bf16.mxu0 0
    %446 = vmatpush1.bf16.msra.mxu0 0
    %447 = vmatprep.subr.bf16.mxu0 0
    %448 = vmatpush1.bf16.msra.mxu0 0
    %449 = vmatprep.subr.bf16.mxu0 0
    %450 = vmatpush1.bf16.msra.mxu0 0
    %451 = vmatprep.subr.bf16.mxu0 0
    %452 = vmatpush1.bf16.msra.mxu0 0
    %453 = vmatprep.mubr.bf16.mxu0 0
    %454 = vmatmul.mubr.bf16.gmra.mrb[0].mxu0 %v167
    %v455 = vpop.f32.mrb[0].mxu0
    %v456 = vadd.f32 %v407, %v455
    %v457 = vpop.f32.mrb[0].mxu0
    %v458 = vpop.f32.mrb[0].mxu0
    %v459 = vadd.f32 %v410, %v458
    %v460 = vpop.f32.mrb[0].mxu0
    %461 = vmatprep.mubr.bf16.mxu0 0
    %462 = vmatmul.mubr.bf16.gmra.mrb[0].mxu0 %v170
    %v463 = vpop.f32.mrb[0].mxu0
    %v464 = vadd.f32 %v415, %v463
    %v465 = vpop.f32.mrb[0].mxu0
    %v466 = vpop.f32.mrb[0].mxu0
    %v467 = vadd.f32 %v418, %v466
    %v468 = vpop.f32.mrb[0].mxu0
    %469 = vdwg.mxu0
    %v470 = vadd.f32 %v102, %v456
    %v471 = vadd.f32 %v103, %v459
    %v472 = vadd.f32 %v104, %v464
    %v473 = vadd.f32 %v105, %v467
    %v474 = vpack.c.bf16 %v471, %v470
    %v475 = vpack.c.bf16 %v473, %v472
    %v476 = vld [vmem:[#allocation7] sm:$0xf]
    %v477 = vld [vmem:[#allocation7 + $0x4] sm:$0xf]
    %v478 = vld [vmem:[#allocation7 + $0x8] sm:$0xf]
    %v479 = vld [vmem:[#allocation7 + $0xc] sm:$0xf]
    %v480 = vld [vmem:[#allocation7 + $0x10] sm:$0xf]
    %v481 = vld [vmem:[#allocation7 + $0x14] sm:$0xf]
    %v482 = vld [vmem:[#allocation7 + $0x18] sm:$0xf]
    %v483 = vld [vmem:[#allocation7 + $0x1c] sm:$0xf]
    %v484 = vld [vmem:[#allocation7 + $0x20] sm:$0xf]
    %v485 = vld [vmem:[#allocation7 + $0x24] sm:$0xf]
    %v486 = vld [vmem:[#allocation7 + $0x28] sm:$0xf]
    %v487 = vld [vmem:[#allocation7 + $0x2c] sm:$0xf]
    %v488 = vld [vmem:[#allocation7 + $0x30] sm:$0xf]
    %v489 = vld [vmem:[#allocation7 + $0x34] sm:$0xf]
    %v490 = vld [vmem:[#allocation7 + $0x38] sm:$0xf]
    %v491 = vld [vmem:[#allocation7 + $0x3c] sm:$0xf]
    %v492 = vld [vmem:[%s4] sm:$0x1]
    %v494 = vlaneseq
    %v495 = vshrl.u32 %v494, 7
    %v496 = vsub.s32 0, %v495
    %v497 = vrot.slane %v492, %v496
    %v515 = vunpack.c.l.b16 %v476
    %v516 = vunpack.c.l.b16 %v477
    %v517 = vunpack.c.l.b16 %v478
    %v518 = vunpack.c.l.b16 %v479
    %v519 = vunpack.c.l.b16 %v480
    %v520 = vunpack.c.l.b16 %v481
    %v521 = vunpack.c.l.b16 %v482
    %v522 = vunpack.c.l.b16 %v483
    %v523 = vunpack.c.l.b16 %v484
    %v524 = vunpack.c.l.b16 %v485
    %v525 = vunpack.c.l.b16 %v486
    %v526 = vunpack.c.l.b16 %v487
    %v527 = vunpack.c.l.b16 %v488
    %v528 = vunpack.c.l.b16 %v489
    %v529 = vunpack.c.l.b16 %v490
    %v530 = vunpack.c.l.b16 %v491
    %v531 = vpack.c.b16 %v516, %v515
    %v532 = vpack.c.b16 %v518, %v517
    %v533 = vpack.c.b16 %v520, %v519
    %v534 = vpack.c.b16 %v522, %v521
    %v535 = vpack.c.b16 %v524, %v523
    %v536 = vpack.c.b16 %v526, %v525
    %v537 = vpack.c.b16 %v528, %v527
    %v538 = vpack.c.b16 %v530, %v529
    %547 = vmatprep.subr.bf16.mxu0 0
    %548 = vmatpush1.bf16.msra.mxu0 %v531
    %549 = vmatprep.subr.bf16.mxu0 0
    %550 = vmatpush1.bf16.msra.mxu0 %v532
    %551 = vmatprep.subr.bf16.mxu0 0
    %552 = vmatpush1.bf16.msra.mxu0 %v533
    %553 = vmatprep.subr.bf16.mxu0 0
    %554 = vmatpush1.bf16.msra.mxu0 %v534
    %555 = vmatprep.subr.bf16.mxu0 0
    %556 = vmatpush1.bf16.msra.mxu0 %v535
    %557 = vmatprep.subr.bf16.mxu0 0
    %558 = vmatpush1.bf16.msra.mxu0 %v536
    %559 = vmatprep.subr.bf16.mxu0 0
    %560 = vmatpush1.bf16.msra.mxu0 %v537
    %561 = vmatprep.subr.bf16.mxu0 0
    %562 = vmatpush1.bf16.msra.mxu0 %v538
    %563 = vmatprep.subr.bf16.mxu0 0
    %564 = vmatpush1.bf16.msra.mxu0 0
    %565 = vmatprep.subr.bf16.mxu0 0
    %566 = vmatpush1.bf16.msra.mxu0 0
    %567 = vmatprep.subr.bf16.mxu0 0
    %568 = vmatpush1.bf16.msra.mxu0 0
    %569 = vmatprep.subr.bf16.mxu0 0
    %570 = vmatpush1.bf16.msra.mxu0 0
    %571 = vmatprep.subr.bf16.mxu0 0
    %572 = vmatpush1.bf16.msra.mxu0 0
    %573 = vmatprep.subr.bf16.mxu0 0
    %574 = vmatpush1.bf16.msra.mxu0 0
    %575 = vmatprep.subr.bf16.mxu0 0
    %576 = vmatpush1.bf16.msra.mxu0 0
    %577 = vmatprep.subr.bf16.mxu0 0
    %578 = vmatpush1.bf16.msra.mxu0 0
    %579 = vmatprep.mubr.bf16.mxu0 0
    %580 = vmatmul.mubr.bf16.gmra.mrb[0].mxu0 %v474
    %v581 = vpop.f32.mrb[0].mxu0
    %v582 = vadd.f32 %v497, %v581
    %v583 = vpop.f32.mrb[0].mxu0
    %v584 = vpop.f32.mrb[0].mxu0
    %v585 = vadd.f32 %v497, %v584
    %v586 = vpop.f32.mrb[0].mxu0
    %587 = vmatprep.mubr.bf16.mxu0 0
    %588 = vmatmul.mubr.bf16.gmra.mrb[0].mxu0 %v475
    %v589 = vpop.f32.mrb[0].mxu0
    %v590 = vadd.f32 %v497, %v589
    %v591 = vpop.f32.mrb[0].mxu0
    %v592 = vpop.f32.mrb[0].mxu0
    %v593 = vadd.f32 %v497, %v592
    %v594 = vpop.f32.mrb[0].mxu0
    %595 = vdwg.mxu0
    %v596 = vpack.c.bf16 %v585, %v582
    %v597 = vpack.c.bf16 %v593, %v590
    %v600 = vrot.slane %v596, 7
    %v601 = vrot.slane %v597, 7
    %vm602 = vcmask 1040384
    %v605 = vsel %vm602, 0, %v600
    %v608 = vsel %vm602, 0, %v601
    %v610 = vsel %vm602, %v600, 0
    %v611 = vsel %vm602, %v601, 0
    %v612 = vshrl.u32 %v605, 16
    %v614 = vshll.u32 %v605, 16
    %v616 = vrot.slane %v614, 1
    %v617 = vor.u32 %v612, %v616
    %v618 = vshll.u32 %v610, 16
    %v620 = vrot.slane %v618, 1
    %v621 = vsel %vm133, %v617, %v620
    %v622 = vshrl.u32 %v608, 16
    %v624 = vshll.u32 %v608, 16
    %v626 = vrot.slane %v624, 1
    %v627 = vor.u32 %v622, %v626
    %v628 = vshll.u32 %v611, 16
    %v630 = vrot.slane %v628, 1
    %v631 = vsel %vm133, %v627, %v630
    %v638 = vrot.slane %v605, 1
    %v639 = vrot.slane %v610, 1
    %v640 = vsel %vm164, %v638, %v639
    %v641 = vrot.slane %v608, 1
    %v642 = vrot.slane %v611, 1
    %v643 = vsel %vm164, %v641, %v642
    %vm646 = vsmask.f32 6400
    %v647 = vrot.slane %v612, 1
    %v648 = vrot.slane %v614, 2
    %v649 = vor.u32 %v647, %v648
    %v650 = vshrl.u32 %v610, 16
    %v652 = vrot.slane %v650, 1
    %v653 = vrot.slane %v618, 2
    %v654 = vor.u32 %v652, %v653
    %v655 = vsel %vm646, %v649, %v654
    %v656 = vrot.slane %v622, 1
    %v657 = vrot.slane %v624, 2
    %v658 = vor.u32 %v656, %v657
    %v659 = vshrl.u32 %v611, 16
    %v661 = vrot.slane %v659, 1
    %v662 = vrot.slane %v628, 2
    %v663 = vor.u32 %v661, %v662
    %v664 = vsel %vm646, %v658, %v663
    %vm667 = vcmask 1045504
    %v668 = vrot.slane %v605, 2
    %v669 = vrot.slane %v610, 2
    %v670 = vsel %vm667, %v668, %v669
    %v671 = vrot.slane %v608, 2
    %v672 = vrot.slane %v611, 2
    %v673 = vsel %vm667, %v671, %v672
    %v676 = vld [vmem:[#allocation8] sm:$0xf]
    %v677 = vld [vmem:[#allocation8 + $0x4] sm:$0xf]
    %v678 = vld [vmem:[#allocation8 + $0x8] sm:$0xf]
    %v679 = vld [vmem:[#allocation8 + $0xc] sm:$0xf]
    %v680 = vld [vmem:[#allocation8 + $0x10] sm:$0xf]
    %v681 = vld [vmem:[#allocation8 + $0x14] sm:$0xf]
    %v682 = vld [vmem:[#allocation8 + $0x18] sm:$0xf]
    %v683 = vld [vmem:[#allocation8 + $0x1c] sm:$0xf]
    %v684 = vld [vmem:[#allocation8 + $0x20] sm:$0xf]
    %v685 = vld [vmem:[#allocation8 + $0x24] sm:$0xf]
    %v686 = vld [vmem:[#allocation8 + $0x28] sm:$0xf]
    %v687 = vld [vmem:[#allocation8 + $0x2c] sm:$0xf]
    %v688 = vld [vmem:[#allocation8 + $0x30] sm:$0xf]
    %v689 = vld [vmem:[#allocation8 + $0x34] sm:$0xf]
    %v690 = vld [vmem:[#allocation8 + $0x38] sm:$0xf]
    %v691 = vld [vmem:[#allocation8 + $0x3c] sm:$0xf]
    %v692 = vld [vmem:[#allocation8 + $0x40] sm:$0xf]
    %v693 = vld [vmem:[#allocation8 + $0x44] sm:$0xf]
    %v694 = vld [vmem:[#allocation8 + $0x48] sm:$0xf]
    %v695 = vld [vmem:[#allocation8 + $0x4c] sm:$0xf]
    %v696 = vld [vmem:[#allocation8 + $0x50] sm:$0xf]
    %v697 = vld [vmem:[#allocation8 + $0x54] sm:$0xf]
    %v698 = vld [vmem:[#allocation8 + $0x58] sm:$0xf]
    %v699 = vld [vmem:[#allocation8 + $0x5c] sm:$0xf]
    %v700 = vld [vmem:[#allocation8 + $0x60] sm:$0xf]
    %v701 = vld [vmem:[#allocation8 + $0x64] sm:$0xf]
    %v702 = vld [vmem:[#allocation8 + $0x68] sm:$0xf]
    %v703 = vld [vmem:[#allocation8 + $0x6c] sm:$0xf]
    %v704 = vld [vmem:[#allocation8 + $0x70] sm:$0xf]
    %v705 = vld [vmem:[#allocation8 + $0x74] sm:$0xf]
    %v706 = vld [vmem:[#allocation8 + $0x78] sm:$0xf]
    %v707 = vld [vmem:[#allocation8 + $0x7c] sm:$0xf]
    %v708 = vld [vmem:[#allocation8 + $0x80] sm:$0xf]
    %v709 = vld [vmem:[#allocation8 + $0x84] sm:$0xf]
    %v710 = vld [vmem:[#allocation8 + $0x88] sm:$0xf]
    %v711 = vld [vmem:[#allocation8 + $0x8c] sm:$0xf]
    %v712 = vld [vmem:[#allocation8 + $0x90] sm:$0xf]
    %v713 = vld [vmem:[#allocation8 + $0x94] sm:$0xf]
    %v714 = vld [vmem:[#allocation8 + $0x98] sm:$0xf]
    %v715 = vld [vmem:[#allocation8 + $0x9c] sm:$0xf]
    %v716 = vld [vmem:[#allocation8 + $0xa0] sm:$0xf]
    %v717 = vld [vmem:[#allocation8 + $0xa4] sm:$0xf]
    %v718 = vld [vmem:[#allocation8 + $0xa8] sm:$0xf]
    %v719 = vld [vmem:[#allocation8 + $0xac] sm:$0xf]
    %v720 = vld [vmem:[#allocation8 + $0xb0] sm:$0xf]
    %v721 = vld [vmem:[#allocation8 + $0xb4] sm:$0xf]
    %v722 = vld [vmem:[#allocation8 + $0xb8] sm:$0xf]
    %v723 = vld [vmem:[#allocation8 + $0xbc] sm:$0xf]
    %v724 = vld [vmem:[#allocation8 + $0xc0] sm:$0xf]
    %v725 = vld [vmem:[#allocation8 + $0xc4] sm:$0xf]
    %v726 = vld [vmem:[#allocation8 + $0xc8] sm:$0xf]
    %v727 = vld [vmem:[#allocation8 + $0xcc] sm:$0xf]
    %v728 = vld [vmem:[#allocation8 + $0xd0] sm:$0xf]
    %v729 = vld [vmem:[#allocation8 + $0xd4] sm:$0xf]
    %v730 = vld [vmem:[#allocation8 + $0xd8] sm:$0xf]
    %v731 = vld [vmem:[#allocation8 + $0xdc] sm:$0xf]
    %v732 = vld [vmem:[#allocation8 + $0xe0] sm:$0xf]
    %v733 = vld [vmem:[#allocation8 + $0xe4] sm:$0xf]
    %v734 = vld [vmem:[#allocation8 + $0xe8] sm:$0xf]
    %v735 = vld [vmem:[#allocation8 + $0xec] sm:$0xf]
    %v736 = vld [vmem:[#allocation8 + $0xf0] sm:$0xf]
    %v737 = vld [vmem:[#allocation8 + $0xf4] sm:$0xf]
    %v738 = vld [vmem:[#allocation8 + $0xf8] sm:$0xf]
    %v739 = vld [vmem:[#allocation8 + $0xfc] sm:$0xf]
    %v740 = vld [vmem:[#allocation8 + $0x100] sm:$0xf]
    %v741 = vld [vmem:[#allocation8 + $0x104] sm:$0xf]
    %v742 = vld [vmem:[#allocation8 + $0x108] sm:$0xf]
    %v743 = vld [vmem:[#allocation8 + $0x10c] sm:$0xf]
    %v744 = vld [vmem:[#allocation8 + $0x110] sm:$0xf]
    %v745 = vld [vmem:[#allocation8 + $0x114] sm:$0xf]
    %v746 = vld [vmem:[#allocation8 + $0x118] sm:$0xf]
    %v747 = vld [vmem:[#allocation8 + $0x11c] sm:$0xf]
    %v748 = vld [vmem:[#allocation8 + $0x120] sm:$0xf]
    %v749 = vld [vmem:[#allocation8 + $0x124] sm:$0xf]
    %v750 = vld [vmem:[#allocation8 + $0x128] sm:$0xf]
    %v751 = vld [vmem:[#allocation8 + $0x12c] sm:$0xf]
    %v752 = vld [vmem:[#allocation8 + $0x130] sm:$0xf]
    %v753 = vld [vmem:[#allocation8 + $0x134] sm:$0xf]
    %v754 = vld [vmem:[#allocation8 + $0x138] sm:$0xf]
    %v755 = vld [vmem:[#allocation8 + $0x13c] sm:$0xf]
    %v756 = vld [vmem:[%s6] sm:$0x1]
    %v758 = vlaneseq
    %v759 = vshrl.u32 %v758, 7
    %v760 = vsub.s32 0, %v759
    %v761 = vrot.slane %v756, %v760
    %v843 = vunpack.c.l.b16 %v676
    %v844 = vunpack.c.l.b16 %v677
    %v845 = vunpack.c.l.b16 %v678
    %v846 = vunpack.c.l.b16 %v679
    %v847 = vunpack.c.l.b16 %v680
    %v848 = vunpack.c.l.b16 %v681
    %v849 = vunpack.c.l.b16 %v682
    %v850 = vunpack.c.l.b16 %v683
    %v851 = vunpack.c.l.b16 %v684
    %v852 = vunpack.c.l.b16 %v685
    %v853 = vunpack.c.l.b16 %v686
    %v854 = vunpack.c.l.b16 %v687
    %v855 = vunpack.c.l.b16 %v688
    %v856 = vunpack.c.l.b16 %v689
    %v857 = vunpack.c.l.b16 %v690
    %v858 = vunpack.c.l.b16 %v691
    %v859 = vunpack.c.l.b16 %v692
    %v860 = vunpack.c.l.b16 %v693
    %v861 = vunpack.c.l.b16 %v694
    %v862 = vunpack.c.l.b16 %v695
    %v863 = vunpack.c.l.b16 %v696
    %v864 = vunpack.c.l.b16 %v697
    %v865 = vunpack.c.l.b16 %v698
    %v866 = vunpack.c.l.b16 %v699
    %v867 = vunpack.c.l.b16 %v700
    %v868 = vunpack.c.l.b16 %v701
    %v869 = vunpack.c.l.b16 %v702
    %v870 = vunpack.c.l.b16 %v703
    %v871 = vunpack.c.l.b16 %v704
    %v872 = vunpack.c.l.b16 %v705
    %v873 = vunpack.c.l.b16 %v706
    %v874 = vunpack.c.l.b16 %v707
    %v875 = vunpack.c.l.b16 %v708
    %v876 = vunpack.c.l.b16 %v709
    %v877 = vunpack.c.l.b16 %v710
    %v878 = vunpack.c.l.b16 %v711
    %v879 = vunpack.c.l.b16 %v712
    %v880 = vunpack.c.l.b16 %v713
    %v881 = vunpack.c.l.b16 %v714
    %v882 = vunpack.c.l.b16 %v715
    %v883 = vunpack.c.l.b16 %v716
    %v884 = vunpack.c.l.b16 %v717
    %v885 = vunpack.c.l.b16 %v718
    %v886 = vunpack.c.l.b16 %v719
    %v887 = vunpack.c.l.b16 %v720
    %v888 = vunpack.c.l.b16 %v721
    %v889 = vunpack.c.l.b16 %v722
    %v890 = vunpack.c.l.b16 %v723
    %v891 = vunpack.c.l.b16 %v724
    %v892 = vunpack.c.l.b16 %v725
    %v893 = vunpack.c.l.b16 %v726
    %v894 = vunpack.c.l.b16 %v727
    %v895 = vunpack.c.l.b16 %v728
    %v896 = vunpack.c.l.b16 %v729
    %v897 = vunpack.c.l.b16 %v730
    %v898 = vunpack.c.l.b16 %v731
    %v899 = vunpack.c.l.b16 %v732
    %v900 = vunpack.c.l.b16 %v733
    %v901 = vunpack.c.l.b16 %v734
    %v902 = vunpack.c.l.b16 %v735
    %v903 = vunpack.c.l.b16 %v736
    %v904 = vunpack.c.l.b16 %v737
    %v905 = vunpack.c.l.b16 %v738
    %v906 = vunpack.c.l.b16 %v739
    %v907 = vunpack.c.l.b16 %v740
    %v908 = vunpack.c.l.b16 %v741
    %v909 = vunpack.c.l.b16 %v742
    %v910 = vunpack.c.l.b16 %v743
    %v911 = vunpack.c.l.b16 %v744
    %v912 = vunpack.c.l.b16 %v745
    %v913 = vunpack.c.l.b16 %v746
    %v914 = vunpack.c.l.b16 %v747
    %v915 = vunpack.c.l.b16 %v748
    %v916 = vunpack.c.l.b16 %v749
    %v917 = vunpack.c.l.b16 %v750
    %v918 = vunpack.c.l.b16 %v751
    %v919 = vunpack.c.l.b16 %v752
    %v920 = vunpack.c.l.b16 %v753
    %v921 = vunpack.c.l.b16 %v754
    %v922 = vunpack.c.l.b16 %v755
    %v923 = vpack.c.b16 %v844, %v843
    %v924 = vpack.c.b16 %v846, %v845
    %v925 = vpack.c.b16 %v848, %v847
    %v926 = vpack.c.b16 %v850, %v849
    %v927 = vpack.c.b16 %v852, %v851
    %v928 = vpack.c.b16 %v854, %v853
    %v929 = vpack.c.b16 %v856, %v855
    %v930 = vpack.c.b16 %v858, %v857
    %v931 = vpack.c.b16 %v860, %v859
    %v932 = vpack.c.b16 %v862, %v861
    %v933 = vpack.c.b16 %v864, %v863
    %v934 = vpack.c.b16 %v866, %v865
    %v935 = vpack.c.b16 %v868, %v867
    %v936 = vpack.c.b16 %v870, %v869
    %v937 = vpack.c.b16 %v872, %v871
    %v938 = vpack.c.b16 %v874, %v873
    %v939 = vpack.c.b16 %v876, %v875
    %v940 = vpack.c.b16 %v878, %v877
    %v941 = vpack.c.b16 %v880, %v879
    %v942 = vpack.c.b16 %v882, %v881
    %v943 = vpack.c.b16 %v884, %v883
    %v944 = vpack.c.b16 %v886, %v885
    %v945 = vpack.c.b16 %v888, %v887
    %v946 = vpack.c.b16 %v890, %v889
    %v947 = vpack.c.b16 %v892, %v891
    %v948 = vpack.c.b16 %v894, %v893
    %v949 = vpack.c.b16 %v896, %v895
    %v950 = vpack.c.b16 %v898, %v897
    %v951 = vpack.c.b16 %v900, %v899
    %v952 = vpack.c.b16 %v902, %v901
    %v953 = vpack.c.b16 %v904, %v903
    %v954 = vpack.c.b16 %v906, %v905
    %v955 = vpack.c.b16 %v908, %v907
    %v956 = vpack.c.b16 %v910, %v909
    %v957 = vpack.c.b16 %v912, %v911
    %v958 = vpack.c.b16 %v914, %v913
    %v959 = vpack.c.b16 %v916, %v915
    %v960 = vpack.c.b16 %v918, %v917
    %v961 = vpack.c.b16 %v920, %v919
    %v962 = vpack.c.b16 %v922, %v921
    %1003 = vmatprep.subr.bf16.mxu0 0
    %1004 = vmatpush1.bf16.msra.mxu0 %v923
    %1005 = vmatprep.subr.bf16.mxu0 0
    %1006 = vmatpush1.bf16.msra.mxu0 %v924
    %1007 = vmatprep.subr.bf16.mxu0 0
    %1008 = vmatpush1.bf16.msra.mxu0 %v925
    %1009 = vmatprep.subr.bf16.mxu0 0
    %1010 = vmatpush1.bf16.msra.mxu0 %v926
    %1011 = vmatprep.subr.bf16.mxu0 0
    %1012 = vmatpush1.bf16.msra.mxu0 %v927
    %1013 = vmatprep.subr.bf16.mxu0 0
    %1014 = vmatpush1.bf16.msra.mxu0 %v928
    %1015 = vmatprep.subr.bf16.mxu0 0
    %1016 = vmatpush1.bf16.msra.mxu0 %v929
    %1017 = vmatprep.subr.bf16.mxu0 0
    %1018 = vmatpush1.bf16.msra.mxu0 %v930
    %1019 = vmatprep.subr.bf16.mxu0 0
    %1020 = vmatpush1.bf16.msra.mxu0 %v931
    %1021 = vmatprep.subr.bf16.mxu0 0
    %1022 = vmatpush1.bf16.msra.mxu0 %v932
    %1023 = vmatprep.subr.bf16.mxu0 0
    %1024 = vmatpush1.bf16.msra.mxu0 %v933
    %1025 = vmatprep.subr.bf16.mxu0 0
    %1026 = vmatpush1.bf16.msra.mxu0 %v934
    %1027 = vmatprep.subr.bf16.mxu0 0
    %1028 = vmatpush1.bf16.msra.mxu0 %v935
    %1029 = vmatprep.subr.bf16.mxu0 0
    %1030 = vmatpush1.bf16.msra.mxu0 %v936
    %1031 = vmatprep.subr.bf16.mxu0 0
    %1032 = vmatpush1.bf16.msra.mxu0 %v937
    %1033 = vmatprep.subr.bf16.mxu0 0
    %1034 = vmatpush1.bf16.msra.mxu0 %v938
    %1035 = vmatprep.mubr.bf16.mxu0 %v621
    %1036 = vmatmul.mubr.bf16.gmra.mrb[0].mxu0 %v605
    %v1037 = vpop.f32.mrb[0].mxu0
    %v1038 = vadd.f32 %v761, %v1037
    %v1039 = vpop.f32.mrb[0].mxu0
    %v1040 = vpop.f32.mrb[0].mxu0
    %v1041 = vadd.f32 %v761, %v1040
    %v1042 = vpop.f32.mrb[0].mxu0
    %1043 = vmatprep.mubr.bf16.mxu0 %v631
    %1044 = vmatmul.mubr.bf16.gmra.mrb[0].mxu0 %v608
    %v1045 = vpop.f32.mrb[0].mxu0
    %v1046 = vadd.f32 %v761, %v1045
    %v1047 = vpop.f32.mrb[0].mxu0
    %v1048 = vpop.f32.mrb[0].mxu0
    %v1049 = vadd.f32 %v761, %v1048
    %v1050 = vpop.f32.mrb[0].mxu0
    %1051 = vdwg.mxu0
    %1052 = vmatprep.subr.bf16.mxu0 0
    %1053 = vmatpush1.bf16.msra.mxu0 %v939
    %1054 = vmatprep.subr.bf16.mxu0 0
    %1055 = vmatpush1.bf16.msra.mxu0 %v940
    %1056 = vmatprep.subr.bf16.mxu0 0
    %1057 = vmatpush1.bf16.msra.mxu0 %v941
    %1058 = vmatprep.subr.bf16.mxu0 0
    %1059 = vmatpush1.bf16.msra.mxu0 %v942
    %1060 = vmatprep.subr.bf16.mxu0 0
    %1061 = vmatpush1.bf16.msra.mxu0 %v943
    %1062 = vmatprep.subr.bf16.mxu0 0
    %1063 = vmatpush1.bf16.msra.mxu0 %v944
    %1064 = vmatprep.subr.bf16.mxu0 0
    %1065 = vmatpush1.bf16.msra.mxu0 %v945
    %1066 = vmatprep.subr.bf16.mxu0 0
    %1067 = vmatpush1.bf16.msra.mxu0 %v946
    %1068 = vmatprep.subr.bf16.mxu0 0
    %1069 = vmatpush1.bf16.msra.mxu0 %v947
    %1070 = vmatprep.subr.bf16.mxu0 0
    %1071 = vmatpush1.bf16.msra.mxu0 %v948
    %1072 = vmatprep.subr.bf16.mxu0 0
    %1073 = vmatpush1.bf16.msra.mxu0 %v949
    %1074 = vmatprep.subr.bf16.mxu0 0
    %1075 = vmatpush1.bf16.msra.mxu0 %v950
    %1076 = vmatprep.subr.bf16.mxu0 0
    %1077 = vmatpush1.bf16.msra.mxu0 %v951
    %1078 = vmatprep.subr.bf16.mxu0 0
    %1079 = vmatpush1.bf16.msra.mxu0 %v952
    %1080 = vmatprep.subr.bf16.mxu0 0
    %1081 = vmatpush1.bf16.msra.mxu0 %v953
    %1082 = vmatprep.subr.bf16.mxu0 0
    %1083 = vmatpush1.bf16.msra.mxu0 %v954
    %1084 = vmatprep.mubr.bf16.mxu0 %v655
    %1085 = vmatmul.mubr.bf16.gmra.mrb[0].mxu0 %v640
    %v1086 = vpop.f32.mrb[0].mxu0
    %v1087 = vadd.f32 %v1038, %v1086
    %v1088 = vpop.f32.mrb[0].mxu0
    %v1089 = vpop.f32.mrb[0].mxu0
    %v1090 = vadd.f32 %v1041, %v1089
    %v1091 = vpop.f32.mrb[0].mxu0
    %1092 = vmatprep.mubr.bf16.mxu0 %v664
    %1093 = vmatmul.mubr.bf16.gmra.mrb[0].mxu0 %v643
    %v1094 = vpop.f32.mrb[0].mxu0
    %v1095 = vadd.f32 %v1046, %v1094
    %v1096 = vpop.f32.mrb[0].mxu0
    %v1097 = vpop.f32.mrb[0].mxu0
    %v1098 = vadd.f32 %v1049, %v1097
    %v1099 = vpop.f32.mrb[0].mxu0
    %1100 = vdwg.mxu0
    %1101 = vmatprep.subr.bf16.mxu0 0
    %1102 = vmatpush1.bf16.msra.mxu0 %v955
    %1103 = vmatprep.subr.bf16.mxu0 0
    %1104 = vmatpush1.bf16.msra.mxu0 %v956
    %1105 = vmatprep.subr.bf16.mxu0 0
    %1106 = vmatpush1.bf16.msra.mxu0 %v957
    %1107 = vmatprep.subr.bf16.mxu0 0
    %1108 = vmatpush1.bf16.msra.mxu0 %v958
    %1109 = vmatprep.subr.bf16.mxu0 0
    %1110 = vmatpush1.bf16.msra.mxu0 %v959
    %1111 = vmatprep.subr.bf16.mxu0 0
    %1112 = vmatpush1.bf16.msra.mxu0 %v960
    %1113 = vmatprep.subr.bf16.mxu0 0
    %1114 = vmatpush1.bf16.msra.mxu0 %v961
    %1115 = vmatprep.subr.bf16.mxu0 0
    %1116 = vmatpush1.bf16.msra.mxu0 %v962
    %1117 = vmatprep.subr.bf16.mxu0 0
    %1118 = vmatpush1.bf16.msra.mxu0 0
    %1119 = vmatprep.subr.bf16.mxu0 0
    %1120 = vmatpush1.bf16.msra.mxu0 0
    %1121 = vmatprep.subr.bf16.mxu0 0
    %1122 = vmatpush1.bf16.msra.mxu0 0
    %1123 = vmatprep.subr.bf16.mxu0 0
    %1124 = vmatpush1.bf16.msra.mxu0 0
    %1125 = vmatprep.subr.bf16.mxu0 0
    %1126 = vmatpush1.bf16.msra.mxu0 0
    %1127 = vmatprep.subr.bf16.mxu0 0
    %1128 = vmatpush1.bf16.msra.mxu0 0
    %1129 = vmatprep.subr.bf16.mxu0 0
    %1130 = vmatpush1.bf16.msra.mxu0 0
    %1131 = vmatprep.subr.bf16.mxu0 0
    %1132 = vmatpush1.bf16.msra.mxu0 0
    %1133 = vmatprep.mubr.bf16.mxu0 0
    %1134 = vmatmul.mubr.bf16.gmra.mrb[0].mxu0 %v670
    %v1135 = vpop.f32.mrb[0].mxu0
    %v1136 = vadd.f32 %v1087, %v1135
    %v1137 = vpop.f32.mrb[0].mxu0
    %v1138 = vpop.f32.mrb[0].mxu0
    %v1139 = vadd.f32 %v1090, %v1138
    %v1140 = vpop.f32.mrb[0].mxu0
    %1141 = vmatprep.mubr.bf16.mxu0 0
    %1142 = vmatmul.mubr.bf16.gmra.mrb[0].mxu0 %v673
    %v1143 = vpop.f32.mrb[0].mxu0
    %v1144 = vadd.f32 %v1095, %v1143
    %v1145 = vpop.f32.mrb[0].mxu0
    %v1146 = vpop.f32.mrb[0].mxu0
    %v1147 = vadd.f32 %v1098, %v1146
    %v1148 = vpop.f32.mrb[0].mxu0
    %1149 = vdwg.mxu0
    %v1150 = vpack.c.bf16 %v1139, %v1136
    %v1151 = vpack.c.bf16 %v1147, %v1144
    %v1152 = vld [vmem:[#allocation10] sm:$0xf]
    %v1153 = vld [vmem:[#allocation10 + $0x4] sm:$0xf]
    %v1154 = vld [vmem:[#allocation10 + $0x8] sm:$0xf]
    %v1155 = vld [vmem:[#allocation10 + $0xc] sm:$0xf]
    %v1156 = vld [vmem:[#allocation10 + $0x10] sm:$0xf]
    %v1157 = vld [vmem:[#allocation10 + $0x14] sm:$0xf]
    %v1158 = vld [vmem:[#allocation10 + $0x18] sm:$0xf]
    %v1159 = vld [vmem:[#allocation10 + $0x1c] sm:$0xf]
    %v1160 = vld [vmem:[#allocation10 + $0x20] sm:$0xf]
    %v1161 = vld [vmem:[#allocation10 + $0x24] sm:$0xf]
    %v1162 = vld [vmem:[#allocation10 + $0x28] sm:$0xf]
    %v1163 = vld [vmem:[#allocation10 + $0x2c] sm:$0xf]
    %v1164 = vld [vmem:[#allocation10 + $0x30] sm:$0xf]
    %v1165 = vld [vmem:[#allocation10 + $0x34] sm:$0xf]
    %v1166 = vld [vmem:[#allocation10 + $0x38] sm:$0xf]
    %v1167 = vld [vmem:[#allocation10 + $0x3c] sm:$0xf]
    %v1168 = vld [vmem:[%s8] sm:$0x1]
    %v1170 = vlaneseq
    %v1171 = vshrl.u32 %v1170, 7
    %v1172 = vsub.s32 0, %v1171
    %v1173 = vrot.slane %v1168, %v1172
    %v1191 = vunpack.c.l.b16 %v1152
    %v1192 = vunpack.c.l.b16 %v1153
    %v1193 = vunpack.c.l.b16 %v1154
    %v1194 = vunpack.c.l.b16 %v1155
    %v1195 = vunpack.c.l.b16 %v1156
    %v1196 = vunpack.c.l.b16 %v1157
    %v1197 = vunpack.c.l.b16 %v1158
    %v1198 = vunpack.c.l.b16 %v1159
    %v1199 = vunpack.c.l.b16 %v1160
    %v1200 = vunpack.c.l.b16 %v1161
    %v1201 = vunpack.c.l.b16 %v1162
    %v1202 = vunpack.c.l.b16 %v1163
    %v1203 = vunpack.c.l.b16 %v1164
    %v1204 = vunpack.c.l.b16 %v1165
    %v1205 = vunpack.c.l.b16 %v1166
    %v1206 = vunpack.c.l.b16 %v1167
    %v1207 = vpack.c.b16 %v1192, %v1191
    %v1208 = vpack.c.b16 %v1194, %v1193
    %v1209 = vpack.c.b16 %v1196, %v1195
    %v1210 = vpack.c.b16 %v1198, %v1197
    %v1211 = vpack.c.b16 %v1200, %v1199
    %v1212 = vpack.c.b16 %v1202, %v1201
    %v1213 = vpack.c.b16 %v1204, %v1203
    %v1214 = vpack.c.b16 %v1206, %v1205
    %1223 = vmatprep.subr.bf16.mxu0 0
    %1224 = vmatpush1.bf16.msra.mxu0 %v1207
    %1225 = vmatprep.subr.bf16.mxu0 0
    %1226 = vmatpush1.bf16.msra.mxu0 %v1208
    %1227 = vmatprep.subr.bf16.mxu0 0
    %1228 = vmatpush1.bf16.msra.mxu0 %v1209
    %1229 = vmatprep.subr.bf16.mxu0 0
    %1230 = vmatpush1.bf16.msra.mxu0 %v1210
    %1231 = vmatprep.subr.bf16.mxu0 0
    %1232 = vmatpush1.bf16.msra.mxu0 %v1211
    %1233 = vmatprep.subr.bf16.mxu0 0
    %1234 = vmatpush1.bf16.msra.mxu0 %v1212
    %1235 = vmatprep.subr.bf16.mxu0 0
    %1236 = vmatpush1.bf16.msra.mxu0 %v1213
    %1237 = vmatprep.subr.bf16.mxu0 0
    %1238 = vmatpush1.bf16.msra.mxu0 %v1214
    %1239 = vmatprep.subr.bf16.mxu0 0
    %1240 = vmatpush1.bf16.msra.mxu0 0
    %1241 = vmatprep.subr.bf16.mxu0 0
    %1242 = vmatpush1.bf16.msra.mxu0 0
    %1243 = vmatprep.subr.bf16.mxu0 0
    %1244 = vmatpush1.bf16.msra.mxu0 0
    %1245 = vmatprep.subr.bf16.mxu0 0
    %1246 = vmatpush1.bf16.msra.mxu0 0
    %1247 = vmatprep.subr.bf16.mxu0 0
    %1248 = vmatpush1.bf16.msra.mxu0 0
    %1249 = vmatprep.subr.bf16.mxu0 0
    %1250 = vmatpush1.bf16.msra.mxu0 0
    %1251 = vmatprep.subr.bf16.mxu0 0
    %1252 = vmatpush1.bf16.msra.mxu0 0
    %1253 = vmatprep.subr.bf16.mxu0 0
    %1254 = vmatpush1.bf16.msra.mxu0 0
    %1255 = vmatprep.mubr.bf16.mxu0 0
    %1256 = vmatmul.mubr.bf16.gmra.mrb[0].mxu0 %v1150
    %v1257 = vpop.f32.mrb[0].mxu0
    %v1258 = vadd.f32 %v1173, %v1257
    %v1259 = vpop.f32.mrb[0].mxu0
    %v1260 = vpop.f32.mrb[0].mxu0
    %v1261 = vadd.f32 %v1173, %v1260
    %v1262 = vpop.f32.mrb[0].mxu0
    %1263 = vmatprep.mubr.bf16.mxu0 0
    %1264 = vmatmul.mubr.bf16.gmra.mrb[0].mxu0 %v1151
    %v1265 = vpop.f32.mrb[0].mxu0
    %v1266 = vadd.f32 %v1173, %v1265
    %v1267 = vpop.f32.mrb[0].mxu0
    %v1268 = vpop.f32.mrb[0].mxu0
    %v1269 = vadd.f32 %v1173, %v1268
    %v1270 = vpop.f32.mrb[0].mxu0
    %1271 = vdwg.mxu0
    %v1272 = vadd.f32 %v470, %v1258
    %v1273 = vadd.f32 %v471, %v1261
    %v1274 = vadd.f32 %v472, %v1266
    %v1275 = vadd.f32 %v473, %v1269
    %1276 = vst [vmem:[#allocation11] sm:$0xff] %v1272
    %1277 = vst [vmem:[#allocation11 + $0x8] sm:$0xff] %v1273
    %1278 = vst [vmem:[#allocation11 + $0x10] sm:$0xff] %v1274
    %1279 = vst [vmem:[#allocation11 + $0x18] sm:$0xff] %v1275
    // Predicated region
    $region58: #{tpu_custom_call.1} parent=1 // pred_check
      _
    $region59: #{tpu_custom_call.1} parent=1 // pred_check_branch
      %1281 = sbr.rel (0) target = $region61
    $region60: #{tpu_custom_call.1} parent=1 // pred_region
      %s1283 = ssub.s32 512, 512
      %1284 = vsyncadd [#allocation4], %s1283
      %s1285 = sshll.u32 [#allocation11], 4
      %s1286 = int_to_ptr.vmem [resolvable:$true] %s1285
      %1291 = dma.vmem_to_hbm [thread:$0]  %s1286, 512, %s9, [#allocation4], 128, 128, 8
    $region61: #{tpu_custom_call.1} parent=1 // pred_fallthru
      _
    // Predicated region
    $region62: #{tpu_custom_call.1} parent=1 // pred_check
      _
    $region63: #{tpu_custom_call.1} parent=1 // pred_check_branch
      %1293 = sbr.rel (0) target = $region65
    $region64: #{tpu_custom_call.1} parent=1 // pred_region
      %1294 = dma.done [#allocation4], 512
    $region65: #{tpu_custom_call.1} parent=1 // pred_fallthru
      _
    %1295 = vsyncpa [#allocation3], 1
    %1296 = vsyncpa [#allocation6], 1
    %1297 = vsyncpa [#allocation9], 1
    %1298 = vsyncpa [#allocation4], 1

</llo_original>
